<compile_context>
chip_gen: v7x
topology: tpu7x:2x2x1
jax: 0.10.0
libtpu: 0.0.40
codegen_flags: <defaults>
</compile_context>

<pallas_src>
import functools

import jax
import jax.numpy as jnp
from jax.experimental import pallas as pl
from jax.experimental.pallas import tpu as pltpu


def _dots_kernel(tgt_ref, ctx_ref, out_ref):
    # tgt_ref: (TB, D)     target embeddings for this block of rows
    # ctx_ref: (TB, C, D)  context embeddings for this block of rows
    # out_ref: (TB, C)     dots output block
    #
    # VPU elementwise multiply + lane reduce, f32 accumulation regardless of
    # the (possibly bf16) input dtype.  No MXU, no transpose.
    tgt = tgt_ref[...].astype(jnp.float32)             # (TB, D)
    ctx = ctx_ref[...].astype(jnp.float32)             # (TB, C, D)
    dots = jnp.sum(ctx * tgt[:, None, :], axis=-1)     # (TB, C), f32
    out_ref[...] = dots.astype(out_ref.dtype)


def _round_up(x, m):
    return pl.cdiv(x, m) * m


def _choose_block_rows(n_batch, n_ctx, enc_size, itemsize,
                       vmem_budget_bytes=8 * 1024 * 1024):
    """Pick TB (batch rows per grid step): big, multiple of 8, VMEM-bounded."""
    # Inputs are double-buffered by the Pallas pipeline; outputs are f32.
    per_row = 2 * (enc_size + n_ctx * enc_size) * itemsize + 2 * n_ctx * 4
    tb = vmem_budget_bytes // max(per_row, 1)
    tb = min(int(tb), 1024, _round_up(n_batch, 8))
    tb = max(8, (tb // 8) * 8)
    return tb


def item2vec_dots(tgt_emb, ctx_emb, block_rows=None):
    """tgt_emb: (B, D), ctx_emb: (B, C, D) -> dots (B, C) f32."""
    n_batch, enc_size = tgt_emb.shape
    b2, n_ctx, d2 = ctx_emb.shape
    assert (b2, d2) == (n_batch, enc_size)

    tb = block_rows or _choose_block_rows(
        n_batch, n_ctx, enc_size, jnp.dtype(tgt_emb.dtype).itemsize)
    b_pad = _round_up(n_batch, tb)
    if b_pad != n_batch:
        # Ragged tail: pad rows (zeros -> zero dots), sliced off below.
        tgt_emb = jnp.pad(tgt_emb, ((0, b_pad - n_batch), (0, 0)))
        ctx_emb = jnp.pad(ctx_emb, ((0, b_pad - n_batch), (0, 0), (0, 0)))

    dots = pl.pallas_call(
        _dots_kernel,
        out_shape=jax.ShapeDtypeStruct((b_pad, n_ctx), jnp.float32),
        grid=(b_pad // tb,),
        in_specs=[
            pl.BlockSpec((tb, enc_size), lambda b: (b, 0)),
            pl.BlockSpec((tb, n_ctx, enc_size), lambda b: (b, 0, 0)),
        ],
        out_specs=pl.BlockSpec((tb, n_ctx), lambda b: (b, 0)),
        compiler_params=pltpu.CompilerParams(
            dimension_semantics=("parallel",)),
    )(tgt_emb, ctx_emb)

    return dots[:n_batch] if b_pad != n_batch else dots


def item2vec_forward(embedding_table, context_table, target, context,
                     block_rows=None, compute_dtype=None):
    """Full Item2Vec.forward.

    Index gathers are plain-JAX glue (jnp.take); the batched bmm reduction is
    the Pallas kernel.  `compute_dtype=jnp.bfloat16` halves HBM traffic for
    the gathered embeddings; accumulation stays f32 inside the kernel.
    """
    n_batch = target.shape[0]
    n_ctx = context.shape[1]
    enc_size = embedding_table.shape[1]

    if compute_dtype is not None:
        embedding_table = embedding_table.astype(compute_dtype)
        context_table = context_table.astype(compute_dtype)

    tb = block_rows or _choose_block_rows(
        n_batch, n_ctx, enc_size, jnp.dtype(embedding_table.dtype).itemsize)
    b_pad = _round_up(n_batch, tb)
    if b_pad != n_batch:
        # Pad the (tiny) index arrays rather than the gathered embeddings, so
        # the gather itself produces already-padded, block-aligned tensors.
        target = jnp.pad(target, (0, b_pad - n_batch))
        context = jnp.pad(context, ((0, b_pad - n_batch), (0, 0)))

    tgt_emb = jnp.take(embedding_table, target, axis=0)    # (B_pad, D)
    ctx_emb = jnp.take(context_table, context, axis=0)     # (B_pad, C, D)

    dots = item2vec_dots(tgt_emb, ctx_emb, block_rows=tb)  # (B_pad, C)
    return dots[:n_batch]


if __name__ == "__main__":
    # Small, forward-consistent shapes.
    input_size = 64     # vocabulary size
    enc_size = 32       # embedding dim
    n_batch = 2
    n_ctx = 8

    key = jax.random.PRNGKey(0)
    k_emb, k_ctx, k_t, k_c = jax.random.split(key, 4)

    embedding_table = jax.random.normal(k_emb, (input_size, enc_size), jnp.float32)
    context_table = jax.random.normal(k_ctx, (input_size, enc_size), jnp.float32)
    target = jax.random.randint(k_t, (n_batch,), 0, input_size, jnp.int32)
    context = jax.random.randint(k_c, (n_batch, n_ctx), 0, input_size, jnp.int32)

    # f32 path (matches the PyTorch module's f32 semantics).
    fwd = jax.jit(functools.partial(item2vec_forward))
    dots = jax.block_until_ready(fwd(embedding_table, context_table, target, context))

    tgt_emb = jnp.take(embedding_table, target, axis=0)
    ctx_emb = jnp.take(context_table, context, axis=0)
    ref = jnp.einsum("bd,bcd->bc", tgt_emb, ctx_emb)
    assert dots.shape == (n_batch, n_ctx)
    assert jnp.allclose(dots, ref, atol=1e-4, rtol=1e-4)

    # bf16-streaming path (halved HBM bytes), f32 accumulation in-kernel.
    dots_bf16 = jax.block_until_ready(
        item2vec_forward(embedding_table, context_table, target, context,
                         compute_dtype=jnp.bfloat16))
    ref_bf16 = jnp.einsum(
        "bd,bcd->bc",
        tgt_emb.astype(jnp.bfloat16).astype(jnp.float32),
        ctx_emb.astype(jnp.bfloat16).astype(jnp.float32))
    assert dots_bf16.shape == (n_batch, n_ctx)
    assert jnp.allclose(dots_bf16, ref_bf16, atol=1e-3, rtol=1e-3)

    print("KERNEL_OK")
</pallas_src>

<mosaic_0001>
module attributes {stable_mosaic.version = 11 : i64} {
  func.func @_dots_kernel(%arg0: i32, %arg1: memref<8x32xf32, #tpu.memory_space<vmem>>, %arg2: memref<8x8x32xf32, #tpu.memory_space<vmem>>, %arg3: memref<8x8xf32, #tpu.memory_space<vmem>>) attributes {dimension_semantics = [#tpu.dimension_semantics<parallel>], iteration_bounds = array<i64: 1>, scalar_prefetch = 0 : i64, scratch_operands = 0 : i64, tpu.core_type = #tpu.core_type<tc>, window_params = [{transform_indices = @transform_0, window_bounds = array<i64: 8, 32>}, {transform_indices = @transform_1, window_bounds = array<i64: 8, 8, 32>}, {transform_indices = @transform_2, window_bounds = array<i64: 8, 8>}]} {
    %c0 = arith.constant 0 : index
    %c0_0 = arith.constant 0 : index
    %0 = vector.load %arg1[%c0, %c0_0] : memref<8x32xf32, #tpu.memory_space<vmem>>, vector<8x32xf32>
    %c0_1 = arith.constant 0 : index
    %c0_2 = arith.constant 0 : index
    %c0_3 = arith.constant 0 : index
    %1 = vector.load %arg2[%c0_1, %c0_2, %c0_3] : memref<8x8x32xf32, #tpu.memory_space<vmem>>, vector<8x8x32xf32>
    %2 = vector.shape_cast %0 : vector<8x32xf32> to vector<8x1x32xf32>
    %3 = vector.broadcast %2 : vector<8x1x32xf32> to vector<8x8x32xf32>
    %4 = arith.mulf %1, %3 : vector<8x8x32xf32>
    %cst = arith.constant dense<0.000000e+00> : vector<8x8xf32>
    %5 = vector.multi_reduction <add>, %4, %cst [2] : vector<8x8x32xf32> to vector<8x8xf32>
    %c0_4 = arith.constant 0 : index
    %c0_5 = arith.constant 0 : index
    %6 = vector.load %arg3[%c0_4, %c0_5] : memref<8x8xf32, #tpu.memory_space<vmem>>, vector<8x8xf32>
    tpu.vector_store %arg3[%c0_4, %c0_5], %5 {strides = array<i32>} : memref<8x8xf32, #tpu.memory_space<vmem>>, vector<8x8xf32>,
    return
  }
  func.func @transform_0(%arg0: i32) -> (i32, i32) {
    %c0_i32 = arith.constant 0 : i32
    %c0_i32_0 = arith.constant 0 : i32
    return %arg0, %c0_i32 : i32, i32
  }
  func.func @transform_1(%arg0: i32) -> (i32, i32, i32) {
    %c0_i32 = arith.constant 0 : i32
    %c0_i32_0 = arith.constant 0 : i32
    %c0_i32_1 = arith.constant 0 : i32
    return %arg0, %c0_i32, %c0_i32_0 : i32, i32, i32
  }
  func.func @transform_2(%arg0: i32) -> (i32, i32) {
    %c0_i32 = arith.constant 0 : i32
    %c0_i32_0 = arith.constant 0 : i32
    return %arg0, %c0_i32 : i32, i32
  }
}

</mosaic_0001>

<llo_original>
// kernel: item2vec_forward.1
$region0: #{item2vec_forward.1}
  #allocation0 [shape = 'u32[]', space=smem, size = 0x4, offset = 0x4, fixed_abs, tag = 'smem constant byte address 0x4 - core index']
  #allocation1 [shape = 'u32[144,128]{1,0:T(1,128)}', space=vmem, size = 0x12000, scoped, tag = 'internal scratch']
  %s0 = inlined_call_operand.vmem [shape: f32[8,32], index: 0, kind: input, shape index: {}]
  %s1 = inlined_call_operand.vmem [shape: f32[8,8,32], index: 1, kind: input, shape index: {}]
  %s2 = inlined_call_operand.vmem [shape: f32[8,8], index: 2, kind: output, shape index: {}]
  %s3 = sld [smem:[#allocation0]]
  $region18: #{item2vec_forward.1} parent=0
    _
  %s5 = ssub.s32 1, %s3
  %s6 = scalar_select 0, %s5, %s3
  // Predicated region
  $region2: #{item2vec_forward.1} parent=0 // pred_check
    _
  $region3: #{item2vec_forward.1} parent=0 // pred_check_branch
    %8 = sbr.rel (0) target = $region5
  $region4: #{item2vec_forward.1} parent=0 // pred_region
    _
  $region5: #{item2vec_forward.1} parent=0 // pred_fallthru
    _
  // Predicated region
  $region6: #{item2vec_forward.1} parent=0 // pred_check
    _
  $region7: #{item2vec_forward.1} parent=0 // pred_check_branch
    %10 = sbr.rel (0) target = $region9
  $region8: #{item2vec_forward.1} parent=0 // pred_region
    _
  $region9: #{item2vec_forward.1} parent=0 // pred_fallthru
    _
  %v11 = vld [vmem:[%s0] sm:$0xff]
  %v12 = vld [vmem:[%s1] sm:$0xff]
  %v13 = vld [vmem:[%s1 + $0x8] sm:$0xff]
  %v14 = vld [vmem:[%s1 + $0x10] sm:$0xff]
  %v15 = vld [vmem:[%s1 + $0x18] sm:$0xff]
  %v16 = vld [vmem:[%s1 + $0x20] sm:$0xff]
  %v17 = vld [vmem:[%s1 + $0x28] sm:$0xff]
  %v18 = vld [vmem:[%s1 + $0x30] sm:$0xff]
  %v19 = vld [vmem:[%s1 + $0x38] sm:$0xff]
  %v21 = vcombine.high %v11, %v11
  %v23 = vunpack.c.l.s4 1966171168
  %v24 = vunpack.c.0.s8 %v23
  %v25 = vlaneseq
  %v26 = vshrl.u32 %v25, 7
  %v27 = vsub.s32 %v24, %v26
  %v28 = vrot.slane %v11, %v27
  %v30 = vunpack.c.l.s4 1966171168
  %v31 = vunpack.c.0.s8 %v30
  %v32 = vlaneseq
  %v33 = vshrl.u32 %v32, 7
  %v34 = vsub.s32 %v31, %v33
  %v35 = vrot.slane %v21, %v34
  %v36 = vcombine.high %v28, %v28
  %v37 = vcombine.high %v35, %v35
  %v39 = vunpack.c.l.s4 1966171168
  %v40 = vunpack.c.0.s8 %v39
  %v41 = vlaneseq
  %v42 = vshrl.u32 %v41, 7
  %v43 = vsub.s32 %v40, %v42
  %v44 = vrot.slane %v28, %v43
  %v46 = vunpack.c.l.s4 1966171168
  %v47 = vunpack.c.0.s8 %v46
  %v48 = vlaneseq
  %v49 = vshrl.u32 %v48, 7
  %v50 = vsub.s32 %v47, %v49
  %v51 = vrot.slane %v35, %v50
  %v53 = vunpack.c.l.s4 1966171168
  %v54 = vunpack.c.0.s8 %v53
  %v55 = vlaneseq
  %v56 = vshrl.u32 %v55, 7
  %v57 = vsub.s32 %v54, %v56
  %v58 = vrot.slane %v36, %v57
  %v60 = vunpack.c.l.s4 1966171168
  %v61 = vunpack.c.0.s8 %v60
  %v62 = vlaneseq
  %v63 = vshrl.u32 %v62, 7
  %v64 = vsub.s32 %v61, %v63
  %v65 = vrot.slane %v37, %v64
  %v66 = vcombine.high %v44, %v44
  %v67 = vcombine.high %v51, %v51
  %v68 = vcombine.high %v58, %v58
  %v69 = vcombine.high %v65, %v65
  %v70 = vlaneseq
  %v71 = vshrl.u32 %v70, 7
  %v72 = vsub.s32 0, %v71
  %v73 = vrot.slane %v44, %v72
  %v74 = vlaneseq
  %v75 = vshrl.u32 %v74, 7
  %v76 = vsub.s32 0, %v75
  %v77 = vrot.slane %v58, %v76
  %v78 = vlaneseq
  %v79 = vshrl.u32 %v78, 7
  %v80 = vsub.s32 0, %v79
  %v81 = vrot.slane %v66, %v80
  %v82 = vlaneseq
  %v83 = vshrl.u32 %v82, 7
  %v84 = vsub.s32 0, %v83
  %v85 = vrot.slane %v68, %v84
  %v86 = vlaneseq
  %v87 = vshrl.u32 %v86, 7
  %v88 = vsub.s32 0, %v87
  %v89 = vrot.slane %v51, %v88
  %v90 = vlaneseq
  %v91 = vshrl.u32 %v90, 7
  %v92 = vsub.s32 0, %v91
  %v93 = vrot.slane %v65, %v92
  %v94 = vlaneseq
  %v95 = vshrl.u32 %v94, 7
  %v96 = vsub.s32 0, %v95
  %v97 = vrot.slane %v67, %v96
  %v98 = vlaneseq
  %v99 = vshrl.u32 %v98, 7
  %v100 = vsub.s32 0, %v99
  %v101 = vrot.slane %v69, %v100
  %v110 = vmul.f32 %v12, %v73
  %v111 = vmul.f32 %v13, %v77
  %v112 = vmul.f32 %v14, %v81
  %v113 = vmul.f32 %v15, %v85
  %v114 = vmul.f32 %v16, %v89
  %v115 = vmul.f32 %v17, %v93
  %v116 = vmul.f32 %v18, %v97
  %v117 = vmul.f32 %v19, %v101
  %vm118 = vcmask 261120
  %v119 = vsel %vm118, %v110, 0.0
  %120 = vadd.xlane.f32.xlu0 %v119
  %v121 = vpop.xlane.xlu0 %120
  %v122 = vsel %vm118, %v111, 0.0
  %123 = vadd.xlane.f32.xlu0 %v122
  %v124 = vpop.xlane.xlu0 %123
  %v125 = vsel %vm118, %v112, 0.0
  %126 = vadd.xlane.f32.xlu0 %v125
  %v127 = vpop.xlane.xlu0 %126
  %v128 = vsel %vm118, %v113, 0.0
  %129 = vadd.xlane.f32.xlu0 %v128
  %v130 = vpop.xlane.xlu0 %129
  %v131 = vsel %vm118, %v114, 0.0
  %132 = vadd.xlane.f32.xlu0 %v131
  %v133 = vpop.xlane.xlu0 %132
  %v134 = vsel %vm118, %v115, 0.0
  %135 = vadd.xlane.f32.xlu0 %v134
  %v136 = vpop.xlane.xlu0 %135
  %v137 = vsel %vm118, %v116, 0.0
  %138 = vadd.xlane.f32.xlu0 %v137
  %v139 = vpop.xlane.xlu0 %138
  %v140 = vsel %vm118, %v117, 0.0
  %141 = vadd.xlane.f32.xlu0 %v140
  %v142 = vpop.xlane.xlu0 %141
  %v151 = vlaneseq
  %v152 = vand.u32 %v151, 127
  %v153 = vlaneseq
  %v154 = vshrl.u32 %v153, 7
  %v155 = vsub.s32 %v152, %v154
  %v156 = vrot.slane %v121, %v155
  %v157 = vlaneseq
  %v158 = vshrl.u32 %v157, 7
  %v159 = vsub.s32 %v152, %v158
  %v160 = vrot.slane %v124, %v159
  %v161 = vlaneseq
  %v162 = vshrl.u32 %v161, 7
  %v163 = vsub.s32 %v152, %v162
  %v164 = vrot.slane %v127, %v163
  %v165 = vlaneseq
  %v166 = vshrl.u32 %v165, 7
  %v167 = vsub.s32 %v152, %v166
  %v168 = vrot.slane %v130, %v167
  %v169 = vlaneseq
  %v170 = vshrl.u32 %v169, 7
  %v171 = vsub.s32 %v152, %v170
  %v172 = vrot.slane %v133, %v171
  %v173 = vlaneseq
  %v174 = vshrl.u32 %v173, 7
  %v175 = vsub.s32 %v152, %v174
  %v176 = vrot.slane %v136, %v175
  %v177 = vlaneseq
  %v178 = vshrl.u32 %v177, 7
  %v179 = vsub.s32 %v152, %v178
  %v180 = vrot.slane %v139, %v179
  %v181 = vlaneseq
  %v182 = vshrl.u32 %v181, 7
  %v183 = vsub.s32 %v152, %v182
  %v184 = vrot.slane %v142, %v183
  %vm185 = vcmask 1041409
  %v186 = vsel %vm185, %v160, %v156
  %vm187 = vcmask 1042434
  %v188 = vsel %vm187, %v164, %v186
  %vm189 = vcmask 1043459
  %v190 = vsel %vm189, %v168, %v188
  %vm191 = vcmask 1044484
  %v192 = vsel %vm191, %v172, %v190
  %vm193 = vcmask 1045509
  %v194 = vsel %vm193, %v176, %v192
  %vm195 = vcmask 1046534
  %v196 = vsel %vm195, %v180, %v194
  %vm197 = vcmask 1047559
  %v198 = vsel %vm197, %v184, %v196
  %vm200 = vcmask 64512
  %201 = vst.msk [vmem:[%s2] sm:$0xff] %vm200, %v198
  // Predicated region
  $region10: #{item2vec_forward.1} parent=0 // pred_check
    _
  $region11: #{item2vec_forward.1} parent=0 // pred_check_branch
    %203 = sbr.rel (0) target = $region13
  $region12: #{item2vec_forward.1} parent=0 // pred_region
    _
  $region13: #{item2vec_forward.1} parent=0 // pred_fallthru
    _
  // Predicated region
  $region14: #{item2vec_forward.1} parent=0 // pred_check
    _
  $region15: #{item2vec_forward.1} parent=0 // pred_check_branch
    %205 = sbr.rel (0) target = $region17
  $region16: #{item2vec_forward.1} parent=0 // pred_region
    _
  $region17: #{item2vec_forward.1} parent=0 // pred_fallthru
    _

</llo_original>
